<compile_context>
chip_gen: v5e
topology: v5e:2x2
jax: 0.10.0
libtpu: 0.0.40
codegen_flags: <defaults>
</compile_context>

<pallas_src>
import functools

import jax
import jax.numpy as jnp
import numpy as np
from jax import lax
from jax.experimental import pallas as pl
from jax.experimental.pallas import tpu as pltpu

EPS = 1e-5
LANE = 128
SUBLANE = 8


def _round_up(x, m):
    return (x + m - 1) // m * m


# --------------------------------------------------------------------------- #
# Kernels
# --------------------------------------------------------------------------- #
def _write_stats(stats_ref, vals_f32):
    """Row 0 = per-feature sum over the tile, row 1 = sum of squares."""
    stats_ref[0:1, :] = jnp.sum(vals_f32, axis=0, keepdims=True)
    stats_ref[1:2, :] = jnp.sum(vals_f32 * vals_f32, axis=0, keepdims=True)


def _first_kernel(x_ref, w_ref, h_ref, stats_ref):
    # x: (tn, Dp) bf16, w: (Dp, Hp) bf16 (VMEM-resident, single-buffered).
    h = jnp.dot(x_ref[...], w_ref[...], preferred_element_type=jnp.float32)
    hb = h.astype(h_ref.dtype)                 # bf16 activation storage
    h_ref[...] = hb
    # Stats from the post-cast values (what the next layer will read).
    _write_stats(stats_ref, hb.astype(jnp.float32))


def _bn_relu_matmul_kernel(h_ref, scale_ref, shift_ref, w_ref, out_ref, stats_ref,
                           *, n_true, tile_n, mask_rows):
    h = h_ref[...].astype(jnp.float32)                         # (tn, Hin)
    a = jnp.maximum(h * scale_ref[...] + shift_ref[...], 0.0)  # fused BN + ReLU
    if mask_rows:
        # Zero batch-padding rows so they contribute exactly zero to the next
        # layer's matmul output and batch statistics.  (Only emitted when
        # padding rows exist; otherwise pure static no-op.)
        row = lax.broadcasted_iota(jnp.int32, a.shape, 0) + pl.program_id(0) * tile_n
        a = jnp.where(row < n_true, a, 0.0)
    z = jnp.dot(a.astype(jnp.bfloat16), w_ref[...],
                preferred_element_type=jnp.float32)
    zb = z.astype(out_ref.dtype)               # bf16 activation storage
    out_ref[...] = zb
    _write_stats(stats_ref, zb.astype(jnp.float32))


def _bn_kernel(z_ref, scale_ref, shift_ref, o_ref):
    o_ref[...] = z_ref[...].astype(jnp.float32) * scale_ref[...] + shift_ref[...]


# --------------------------------------------------------------------------- #
# Parameter preparation (one-time, outside the jitted forward)
# --------------------------------------------------------------------------- #
def prepare_params(params):
    """Pad feature dims to multiples of 128 and cast weights to bf16, once.

    params['bias3'] is intentionally unused: a per-feature constant added right
    before a training-mode BatchNorm is exactly cancelled by the batch-mean
    subtraction (dead compute + dead DMA).
    """
    f32, bf16 = jnp.float32, jnp.bfloat16
    Din, H = params["w1"].shape
    Dout = params["w3"].shape[1]
    Dp, Hp, Op = _round_up(Din, LANE), _round_up(H, LANE), _round_up(Dout, LANE)

    def pad2(a, r, c, dtype):
        a = jnp.asarray(a, f32)
        return jnp.pad(a, ((0, r - a.shape[0]), (0, c - a.shape[1]))).astype(dtype)

    return {
        "w1": pad2(params["w1"], Dp, Hp, bf16),
        "w2": pad2(params["w2"], Hp, Hp, bf16),
        "w3": pad2(params["w3"], Hp, Op, bf16),
        "g1": pad2(params["g1"], 1, Hp, f32), "b1": pad2(params["b1"], 1, Hp, f32),
        "g2": pad2(params["g2"], 1, Hp, f32), "b2": pad2(params["b2"], 1, Hp, f32),
        "g3": pad2(params["g3"], 1, Op, f32), "b3": pad2(params["b3"], 1, Op, f32),
    }


def _finalize_stats(stats, g, b, n_true):
    """(grid*8, H) per-tile (sum, sumsq) partials -> fused BN scale/shift rows."""
    hp = stats.shape[-1]
    st = stats.reshape(-1, SUBLANE, hp)
    s = jnp.sum(st[:, 0, :], axis=0)
    ss = jnp.sum(st[:, 1, :], axis=0)
    mean = s / float(n_true)
    # E[x^2]-E[x]^2 in f32, clamped; fine for normalized activations here.
    var = ss / float(n_true) - mean * mean
    rstd = lax.rsqrt(jnp.maximum(var, 0.0) + EPS)
    scale = rstd * g[0]
    shift = b[0] - mean * scale
    return scale[None, :], shift[None, :]


# --------------------------------------------------------------------------- #
# Forward
# --------------------------------------------------------------------------- #
@functools.partial(jax.jit,
                   static_argnames=("output_dim", "tile_n", "vmem_limit_bytes"))
def simclr_projection_head(x, prepared, output_dim, tile_n=512,
                           vmem_limit_bytes=48 * 1024 * 1024):
    """x: (N, input_dim) f32.  prepared: dict from prepare_params (padded/bf16).

    Defaults (tile_n=512, 48 MiB) are v7x-safe; on v5e/v6e raise tile_n to 1024
    and vmem_limit_bytes to ~96 MiB for better per-step-overhead amortization.
    """
    f32, bf16 = jnp.float32, jnp.bfloat16
    N = x.shape[0]
    Dp, Hp = prepared["w1"].shape
    Op = prepared["w3"].shape[1]

    tn = _round_up(min(tile_n, N), SUBLANE)
    Np = _round_up(N, tn)
    grid = Np // tn
    mask_rows = (Np != N)

    xp = jnp.pad(x.astype(f32), ((0, Np - N), (0, Dp - x.shape[1]))).astype(bf16)

    cparams = pltpu.CompilerParams(
        dimension_semantics=("parallel",),      # batch grid shards across TCs on v7x
        vmem_limit_bytes=vmem_limit_bytes,
    )

    def row_spec(rows, width):
        return pl.BlockSpec((rows, width), lambda i: (i, 0))

    def resident_spec(shape):
        # Constant index_map -> stays VMEM-resident across the grid; single
        # buffered so it costs 1x (not 2x) its size in VMEM.
        return pl.BlockSpec(shape, lambda i: (0, 0), pipeline_mode=pl.Buffered(1))

    def stats_spec(width):
        return pl.BlockSpec((SUBLANE, width), lambda i: (i, 0))

    def stats_shape(width):
        return jax.ShapeDtypeStruct((grid * SUBLANE, width), f32)

    # ---- Layer 1: h1 = x @ W1 (bf16 out) + per-tile batch stats ------------
    h1, st1 = pl.pallas_call(
        _first_kernel,
        grid=(grid,),
        in_specs=[row_spec(tn, Dp), resident_spec((Dp, Hp))],
        out_specs=(row_spec(tn, Hp), stats_spec(Hp)),
        out_shape=(jax.ShapeDtypeStruct((Np, Hp), bf16), stats_shape(Hp)),
        compiler_params=cparams,
        cost_estimate=pl.CostEstimate(
            flops=2 * Np * Dp * Hp, transcendentals=0,
            bytes_accessed=Np * Dp * 2 + Dp * Hp * 2 + Np * Hp * 2),
    )(xp, prepared["w1"])
    s1, t1 = _finalize_stats(st1, prepared["g1"], prepared["b1"], N)

    bn_mm = functools.partial(_bn_relu_matmul_kernel,
                              n_true=N, tile_n=tn, mask_rows=mask_rows)

    # ---- Layer 2: ReLU(BN1(h1)) @ W2 (bf16 out) + stats ---------------------
    h2, st2 = pl.pallas_call(
        bn_mm,
        grid=(grid,),
        in_specs=[row_spec(tn, Hp), resident_spec((1, Hp)), resident_spec((1, Hp)),
                  resident_spec((Hp, Hp))],
        out_specs=(row_spec(tn, Hp), stats_spec(Hp)),
        out_shape=(jax.ShapeDtypeStruct((Np, Hp), bf16), stats_shape(Hp)),
        compiler_params=cparams,
        cost_estimate=pl.CostEstimate(
            flops=2 * Np * Hp * Hp + 4 * Np * Hp, transcendentals=0,
            bytes_accessed=Np * Hp * 2 + Hp * Hp * 2 + Np * Hp * 2),
    )(h1, s1, t1, prepared["w2"])
    s2, t2 = _finalize_stats(st2, prepared["g2"], prepared["b2"], N)

    # ---- Layer 3: ReLU(BN2(h2)) @ W3 (bias folded away, bf16 out) + stats ---
    z, st3 = pl.pallas_call(
        bn_mm,
        grid=(grid,),
        in_specs=[row_spec(tn, Hp), resident_spec((1, Hp)), resident_spec((1, Hp)),
                  resident_spec((Hp, Op))],
        out_specs=(row_spec(tn, Op), stats_spec(Op)),
        out_shape=(jax.ShapeDtypeStruct((Np, Op), bf16), stats_shape(Op)),
        compiler_params=cparams,
        cost_estimate=pl.CostEstimate(
            flops=2 * Np * Hp * Op + 4 * Np * Hp, transcendentals=0,
            bytes_accessed=Np * Hp * 2 + Hp * Op * 2 + Np * Op * 2),
    )(h2, s2, t2, prepared["w3"])
    s3, t3 = _finalize_stats(st3, prepared["g3"], prepared["b3"], N)

    # ---- Final BatchNorm: own (much larger) row tile ------------------------
    # No resident weight shares VMEM here; a small tile would be per-step-
    # overhead bound.  Pick the largest multiple of tn that divides Np and
    # keeps in+out tiles (with double buffering) around ~16 MiB.
    max_bn_rows = max(tn, (16 * 1024 * 1024) // (6 * Op))
    d = max(1, min(grid, max_bn_rows // tn))
    while grid % d:
        d -= 1
    tile_bn = tn * d
    grid_bn = Np // tile_bn

    out = pl.pallas_call(
        _bn_kernel,
        grid=(grid_bn,),
        in_specs=[row_spec(tile_bn, Op), resident_spec((1, Op)), resident_spec((1, Op))],
        out_specs=row_spec(tile_bn, Op),
        out_shape=jax.ShapeDtypeStruct((Np, Op), f32),
        compiler_params=cparams,
        cost_estimate=pl.CostEstimate(
            flops=2 * Np * Op, transcendentals=0,
            bytes_accessed=Np * Op * 2 + Np * Op * 4),
    )(z, s3, t3)

    return out[:N, :output_dim]


# --------------------------------------------------------------------------- #
# Parameters / reference / test
# --------------------------------------------------------------------------- #
def init_params(key, input_dim, hidden_dim, output_dim):
    """Deterministic synthetic init.  Linear weights stored as (in, out)."""
    ks = jax.random.split(key, 8)
    s1 = 1.0 / np.sqrt(input_dim)
    s2 = 1.0 / np.sqrt(hidden_dim)
    return {
        # Linear 1 (bias=False because batch_norm=True)
        "w1": jax.random.uniform(ks[0], (input_dim, hidden_dim), jnp.float32, -s1, s1),
        "g1": jax.random.uniform(ks[1], (1, hidden_dim), jnp.float32, 0.5, 1.5),
        "b1": jax.random.uniform(ks[2], (1, hidden_dim), jnp.float32, -0.1, 0.1),
        # Linear 2 (bias=False)
        "w2": jax.random.uniform(ks[3], (hidden_dim, hidden_dim), jnp.float32, -s2, s2),
        "g2": jax.random.uniform(ks[4], (1, hidden_dim), jnp.float32, 0.5, 1.5),
        "b2": jax.random.uniform(ks[5], (1, hidden_dim), jnp.float32, -0.1, 0.1),
        # Linear 3 (bias=True)
        "w3": jax.random.uniform(ks[6], (hidden_dim, output_dim), jnp.float32, -s2, s2),
        "bias3": jax.random.uniform(ks[7], (1, output_dim), jnp.float32, -s2, s2),
        "g3": jnp.ones((1, output_dim), jnp.float32),
        "b3": jnp.zeros((1, output_dim), jnp.float32),
    }


def _reference(x, p):
    """Mirrors the PyTorch module (including bias3, which the final training-mode
    BN cancels).  Matmul operands are cast to bf16 and intermediate activations
    pass through bf16 to match the kernel's precision policy; BN math is f32."""
    def bn(h, g, b):
        m = jnp.mean(h, axis=0, keepdims=True)
        v = jnp.mean((h - m) ** 2, axis=0, keepdims=True)
        return (h - m) * lax.rsqrt(v + EPS) * g + b

    def dot_bf16(a, w):
        return jnp.dot(a.astype(jnp.bfloat16), w.astype(jnp.bfloat16),
                       preferred_element_type=jnp.float32)

    h1 = dot_bf16(x, p["w1"]).astype(jnp.bfloat16).astype(jnp.float32)
    a1 = jnp.maximum(bn(h1, p["g1"], p["b1"]), 0.0)
    h2 = dot_bf16(a1, p["w2"]).astype(jnp.bfloat16).astype(jnp.float32)
    a2 = jnp.maximum(bn(h2, p["g2"], p["b2"]), 0.0)
    z = dot_bf16(a2, p["w3"]) + p["bias3"]
    return bn(z, p["g3"], p["b3"])


if __name__ == "__main__":
    # Small shapes consistent with the module's forward: x is (batch, input_dim).
    # batch=12 with tile_n=8 exercises multi-tile grid + batch-padding masking.
    batch, input_dim, hidden_dim, output_dim = 12, 32, 64, 16

    key = jax.random.PRNGKey(0)
    kx, kp = jax.random.split(key)
    x = jax.random.normal(kx, (batch, input_dim), jnp.float32)
    params = init_params(kp, input_dim, hidden_dim, output_dim)

    prepared = prepare_params(params)   # one-time pad/cast, outside the jitted fwd
    z = simclr_projection_head(x, prepared, output_dim, tile_n=8)
    z = jax.block_until_ready(z)

    z_ref = _reference(x, params)
    # bf16 activation storage + bf16 MXU operands -> ~1e-2 agreement vs the
    # f32-BN reference.
    np.testing.assert_allclose(np.asarray(z), np.asarray(z_ref), rtol=1e-2, atol=1e-2)

    print("KERNEL_OK")
</pallas_src>

<mosaic_0001>
module attributes {stable_mosaic.version = 11 : i64} {
  func.func @_first_kernel(%arg0: i32, %arg1: memref<8x128xbf16, #tpu.memory_space<vmem>>, %arg2: memref<128x128xbf16, #tpu.memory_space<vmem>>, %arg3: memref<8x128xbf16, #tpu.memory_space<vmem>>, %arg4: memref<8x128xf32, #tpu.memory_space<vmem>>) attributes {dimension_semantics = [#tpu.dimension_semantics<parallel>], iteration_bounds = array<i64: 2>, scalar_prefetch = 0 : i64, scratch_operands = 0 : i64, tpu.core_type = #tpu.core_type<tc>, window_params = [{transform_indices = @transform_0, window_bounds = array<i64: 8, 128>}, {pipeline_mode = #tpu.pipeline_mode<synchronous>, transform_indices = @transform_1, window_bounds = array<i64: 128, 128>}, {transform_indices = @transform_2, window_bounds = array<i64: 8, 128>}, {transform_indices = @transform_3, window_bounds = array<i64: 8, 128>}]} {
    %c0 = arith.constant 0 : index
    %c0_0 = arith.constant 0 : index
    %0 = vector.load %arg1[%c0, %c0_0] : memref<8x128xbf16, #tpu.memory_space<vmem>>, vector<8x128xbf16>
    %c0_1 = arith.constant 0 : index
    %c0_2 = arith.constant 0 : index
    %1 = vector.load %arg2[%c0_1, %c0_2] : memref<128x128xbf16, #tpu.memory_space<vmem>>, vector<128x128xbf16>
    %cst = arith.constant dense<0.000000e+00> : vector<8x128xf32>
    %2 = tpu.matmul %0, %1, %cst {dimension_numbers = #tpu.dot_dimension_numbers<[1], [0], [0], [1], [0, 0, 1, 1], [], []>} : vector<8x128xbf16>, vector<128x128xbf16>, vector<8x128xf32> -> vector<8x128xf32>
    %3 = arith.truncf %2 : vector<8x128xf32> to vector<8x128xbf16>
    %c0_3 = arith.constant 0 : index
    %c0_4 = arith.constant 0 : index
    %4 = vector.load %arg3[%c0_3, %c0_4] : memref<8x128xbf16, #tpu.memory_space<vmem>>, vector<8x128xbf16>
    tpu.vector_store %arg3[%c0_3, %c0_4], %3 {strides = array<i32>} : memref<8x128xbf16, #tpu.memory_space<vmem>>, vector<8x128xbf16>,
    %5 = arith.extf %3 : vector<8x128xbf16> to vector<8x128xf32>
    %cst_5 = arith.constant dense<0.000000e+00> : vector<128xf32>
    %6 = vector.multi_reduction <add>, %5, %cst_5 [0] : vector<8x128xf32> to vector<128xf32>
    %7 = vector.shape_cast %6 : vector<128xf32> to vector<1x128xf32>
    %c0_6 = arith.constant 0 : index
    %c0_7 = arith.constant 0 : index
    %8 = vector.load %arg4[%c0_6, %c0_7] : memref<8x128xf32, #tpu.memory_space<vmem>>, vector<1x128xf32>
    tpu.vector_store %arg4[%c0_6, %c0_7], %7 {strides = array<i32>} : memref<8x128xf32, #tpu.memory_space<vmem>>, vector<1x128xf32>,
    %9 = arith.mulf %5, %5 : vector<8x128xf32>
    %cst_8 = arith.constant dense<0.000000e+00> : vector<128xf32>
    %10 = vector.multi_reduction <add>, %9, %cst_8 [0] : vector<8x128xf32> to vector<128xf32>
    %11 = vector.shape_cast %10 : vector<128xf32> to vector<1x128xf32>
    %c1 = arith.constant 1 : index
    %c0_9 = arith.constant 0 : index
    %12 = vector.load %arg4[%c1, %c0_9] : memref<8x128xf32, #tpu.memory_space<vmem>>, vector<1x128xf32>
    tpu.vector_store %arg4[%c1, %c0_9], %11 {strides = array<i32>} : memref<8x128xf32, #tpu.memory_space<vmem>>, vector<1x128xf32>,
    return
  }
  func.func @transform_0(%arg0: i32) -> (i32, i32) {
    %c0_i32 = arith.constant 0 : i32
    %c0_i32_0 = arith.constant 0 : i32
    return %arg0, %c0_i32 : i32, i32
  }
  func.func @transform_1(%arg0: i32) -> (i32, i32) {
    %c0_i32 = arith.constant 0 : i32
    %c0_i32_0 = arith.constant 0 : i32
    %c0_i32_1 = arith.constant 0 : i32
    return %c0_i32, %c0_i32_0 : i32, i32
  }
  func.func @transform_2(%arg0: i32) -> (i32, i32) {
    %c0_i32 = arith.constant 0 : i32
    %c0_i32_0 = arith.constant 0 : i32
    return %arg0, %c0_i32 : i32, i32
  }
  func.func @transform_3(%arg0: i32) -> (i32, i32) {
    %c0_i32 = arith.constant 0 : i32
    %c0_i32_0 = arith.constant 0 : i32
    return %arg0, %c0_i32 : i32, i32
  }
}

module attributes {stable_mosaic.version = 11 : i64} {
  func.func @_bn_kernel(%arg0: i32, %arg1: memref<16x128xbf16, #tpu.memory_space<vmem>>, %arg2: memref<1x128xf32, #tpu.memory_space<vmem>>, %arg3: memref<1x128xf32, #tpu.memory_space<vmem>>, %arg4: memref<16x128xf32, #tpu.memory_space<vmem>>) attributes {dimension_semantics = [#tpu.dimension_semantics<parallel>], iteration_bounds = array<i64: 1>, scalar_prefetch = 0 : i64, scratch_operands = 0 : i64, tpu.core_type = #tpu.core_type<tc>, window_params = [{transform_indices = @transform_0, window_bounds = array<i64: 16, 128>}, {pipeline_mode = #tpu.pipeline_mode<synchronous>, transform_indices = @transform_1, window_bounds = array<i64: 1, 128>}, {pipeline_mode = #tpu.pipeline_mode<synchronous>, transform_indices = @transform_2, window_bounds = array<i64: 1, 128>}, {transform_indices = @transform_3, window_bounds = array<i64: 16, 128>}]} {
    %c0 = arith.constant 0 : index
    %c0_0 = arith.constant 0 : index
    %0 = vector.load %arg1[%c0, %c0_0] : memref<16x128xbf16, #tpu.memory_space<vmem>>, vector<16x128xbf16>
    %1 = arith.extf %0 : vector<16x128xbf16> to vector<16x128xf32>
    %c0_1 = arith.constant 0 : index
    %c0_2 = arith.constant 0 : index
    %2 = vector.load %arg2[%c0_1, %c0_2] : memref<1x128xf32, #tpu.memory_space<vmem>>, vector<1x128xf32>
    %3 = vector.broadcast %2 : vector<1x128xf32> to vector<16x128xf32>
    %4 = arith.mulf %1, %3 : vector<16x128xf32>
    %c0_3 = arith.constant 0 : index
    %c0_4 = arith.constant 0 : index
    %5 = vector.load %arg3[%c0_3, %c0_4] : memref<1x128xf32, #tpu.memory_space<vmem>>, vector<1x128xf32>
    %6 = vector.broadcast %5 : vector<1x128xf32> to vector<16x128xf32>
    %7 = arith.addf %4, %6 : vector<16x128xf32>
    %c0_5 = arith.constant 0 : index
    %c0_6 = arith.constant 0 : index
    %8 = vector.load %arg4[%c0_5, %c0_6] : memref<16x128xf32, #tpu.memory_space<vmem>>, vector<16x128xf32>
    tpu.vector_store %arg4[%c0_5, %c0_6], %7 {strides = array<i32>} : memref<16x128xf32, #tpu.memory_space<vmem>>, vector<16x128xf32>,
    return
  }
  func.func @transform_0(%arg0: i32) -> (i32, i32) {
    %c0_i32 = arith.constant 0 : i32
    %c0_i32_0 = arith.constant 0 : i32
    return %arg0, %c0_i32 : i32, i32
  }
  func.func @transform_1(%arg0: i32) -> (i32, i32) {
    %c0_i32 = arith.constant 0 : i32
    %c0_i32_0 = arith.constant 0 : i32
    %c0_i32_1 = arith.constant 0 : i32
    return %c0_i32, %c0_i32_0 : i32, i32
  }
  func.func @transform_2(%arg0: i32) -> (i32, i32) {
    %c0_i32 = arith.constant 0 : i32
    %c0_i32_0 = arith.constant 0 : i32
    %c0_i32_1 = arith.constant 0 : i32
    return %c0_i32, %c0_i32_0 : i32, i32
  }
  func.func @transform_3(%arg0: i32) -> (i32, i32) {
    %c0_i32 = arith.constant 0 : i32
    %c0_i32_0 = arith.constant 0 : i32
    return %arg0, %c0_i32 : i32, i32
  }
}

module attributes {stable_mosaic.version = 11 : i64} {
  func.func @_bn_relu_matmul_kernel(%arg0: i32, %arg1: memref<8x128xbf16, #tpu.memory_space<vmem>>, %arg2: memref<1x128xf32, #tpu.memory_space<vmem>>, %arg3: memref<1x128xf32, #tpu.memory_space<vmem>>, %arg4: memref<128x128xbf16, #tpu.memory_space<vmem>>, %arg5: memref<8x128xbf16, #tpu.memory_space<vmem>>, %arg6: memref<8x128xf32, #tpu.memory_space<vmem>>) attributes {dimension_semantics = [#tpu.dimension_semantics<parallel>], iteration_bounds = array<i64: 2>, scalar_prefetch = 0 : i64, scratch_operands = 0 : i64, tpu.core_type = #tpu.core_type<tc>, window_params = [{transform_indices = @transform_0, window_bounds = array<i64: 8, 128>}, {pipeline_mode = #tpu.pipeline_mode<synchronous>, transform_indices = @transform_1, window_bounds = array<i64: 1, 128>}, {pipeline_mode = #tpu.pipeline_mode<synchronous>, transform_indices = @transform_2, window_bounds = array<i64: 1, 128>}, {pipeline_mode = #tpu.pipeline_mode<synchronous>, transform_indices = @transform_3, window_bounds = array<i64: 128, 128>}, {transform_indices = @transform_4, window_bounds = array<i64: 8, 128>}, {transform_indices = @transform_5, window_bounds = array<i64: 8, 128>}]} {
    %c0 = arith.constant 0 : index
    %c0_0 = arith.constant 0 : index
    %0 = vector.load %arg1[%c0, %c0_0] : memref<8x128xbf16, #tpu.memory_space<vmem>>, vector<8x128xbf16>
    %1 = arith.extf %0 : vector<8x128xbf16> to vector<8x128xf32>
    %c0_1 = arith.constant 0 : index
    %c0_2 = arith.constant 0 : index
    %2 = vector.load %arg2[%c0_1, %c0_2] : memref<1x128xf32, #tpu.memory_space<vmem>>, vector<1x128xf32>
    %3 = vector.broadcast %2 : vector<1x128xf32> to vector<8x128xf32>
    %4 = arith.mulf %1, %3 : vector<8x128xf32>
    %c0_3 = arith.constant 0 : index
    %c0_4 = arith.constant 0 : index
    %5 = vector.load %arg3[%c0_3, %c0_4] : memref<1x128xf32, #tpu.memory_space<vmem>>, vector<1x128xf32>
    %6 = vector.broadcast %5 : vector<1x128xf32> to vector<8x128xf32>
    %7 = arith.addf %4, %6 : vector<8x128xf32>
    %cst = arith.constant 0.000000e+00 : f32
    %8 = vector.broadcast %cst : f32 to vector<8x128xf32>
    %9 = arith.maximumf %7, %8 : vector<8x128xf32>
    %10 = tpu.iota {dimensions = array<i32: 0>} : vector<8x128xi32>
    %c8_i32 = arith.constant 8 : i32
    %11 = arith.muli %arg0, %c8_i32 : i32
    %12 = vector.broadcast %11 : i32 to vector<8x128xi32>
    %13 = arith.addi %10, %12 : vector<8x128xi32>
    %c12_i32 = arith.constant 12 : i32
    %14 = vector.broadcast %c12_i32 : i32 to vector<8x128xi32>
    %15 = arith.cmpi slt, %13, %14 : vector<8x128xi32>
    %cst_5 = arith.constant 0.000000e+00 : f32
    %16 = vector.broadcast %cst_5 : f32 to vector<8x128xf32>
    %17 = arith.select %15, %9, %16 : vector<8x128xi1>, vector<8x128xf32>
    %18 = arith.truncf %17 : vector<8x128xf32> to vector<8x128xbf16>
    %c0_6 = arith.constant 0 : index
    %c0_7 = arith.constant 0 : index
    %19 = vector.load %arg4[%c0_6, %c0_7] : memref<128x128xbf16, #tpu.memory_space<vmem>>, vector<128x128xbf16>
    %cst_8 = arith.constant dense<0.000000e+00> : vector<8x128xf32>
    %20 = tpu.matmul %18, %19, %cst_8 {dimension_numbers = #tpu.dot_dimension_numbers<[1], [0], [0], [1], [0, 0, 1, 1], [], []>} : vector<8x128xbf16>, vector<128x128xbf16>, vector<8x128xf32> -> vector<8x128xf32>
    %21 = arith.truncf %20 : vector<8x128xf32> to vector<8x128xbf16>
    %c0_9 = arith.constant 0 : index
    %c0_10 = arith.constant 0 : index
    %22 = vector.load %arg5[%c0_9, %c0_10] : memref<8x128xbf16, #tpu.memory_space<vmem>>, vector<8x128xbf16>
    tpu.vector_store %arg5[%c0_9, %c0_10], %21 {strides = array<i32>} : memref<8x128xbf16, #tpu.memory_space<vmem>>, vector<8x128xbf16>,
    %23 = arith.extf %21 : vector<8x128xbf16> to vector<8x128xf32>
    %cst_11 = arith.constant dense<0.000000e+00> : vector<128xf32>
    %24 = vector.multi_reduction <add>, %23, %cst_11 [0] : vector<8x128xf32> to vector<128xf32>
    %25 = vector.shape_cast %24 : vector<128xf32> to vector<1x128xf32>
    %c0_12 = arith.constant 0 : index
    %c0_13 = arith.constant 0 : index
    %26 = vector.load %arg6[%c0_12, %c0_13] : memref<8x128xf32, #tpu.memory_space<vmem>>, vector<1x128xf32>
    tpu.vector_store %arg6[%c0_12, %c0_13], %25 {strides = array<i32>} : memref<8x128xf32, #tpu.memory_space<vmem>>, vector<1x128xf32>,
    %27 = arith.mulf %23, %23 : vector<8x128xf32>
    %cst_14 = arith.constant dense<0.000000e+00> : vector<128xf32>
    %28 = vector.multi_reduction <add>, %27, %cst_14 [0] : vector<8x128xf32> to vector<128xf32>
    %29 = vector.shape_cast %28 : vector<128xf32> to vector<1x128xf32>
    %c1 = arith.constant 1 : index
    %c0_15 = arith.constant 0 : index
    %30 = vector.load %arg6[%c1, %c0_15] : memref<8x128xf32, #tpu.memory_space<vmem>>, vector<1x128xf32>
    tpu.vector_store %arg6[%c1, %c0_15], %29 {strides = array<i32>} : memref<8x128xf32, #tpu.memory_space<vmem>>, vector<1x128xf32>,
    return
  }
  func.func @transform_0(%arg0: i32) -> (i32, i32) {
    %c0_i32 = arith.constant 0 : i32
    %c0_i32_0 = arith.constant 0 : i32
    return %arg0, %c0_i32 : i32, i32
  }
  func.func @transform_1(%arg0: i32) -> (i32, i32) {
    %c0_i32 = arith.constant 0 : i32
    %c0_i32_0 = arith.constant 0 : i32
    %c0_i32_1 = arith.constant 0 : i32
    return %c0_i32, %c0_i32_0 : i32, i32
  }
  func.func @transform_2(%arg0: i32) -> (i32, i32) {
    %c0_i32 = arith.constant 0 : i32
    %c0_i32_0 = arith.constant 0 : i32
    %c0_i32_1 = arith.constant 0 : i32
    return %c0_i32, %c0_i32_0 : i32, i32
  }
  func.func @transform_3(%arg0: i32) -> (i32, i32) {
    %c0_i32 = arith.constant 0 : i32
    %c0_i32_0 = arith.constant 0 : i32
    %c0_i32_1 = arith.constant 0 : i32
    return %c0_i32, %c0_i32_0 : i32, i32
  }
  func.func @transform_4(%arg0: i32) -> (i32, i32) {
    %c0_i32 = arith.constant 0 : i32
    %c0_i32_0 = arith.constant 0 : i32
    return %arg0, %c0_i32 : i32, i32
  }
  func.func @transform_5(%arg0: i32) -> (i32, i32) {
    %c0_i32 = arith.constant 0 : i32
    %c0_i32_0 = arith.constant 0 : i32
    return %arg0, %c0_i32 : i32, i32
  }
}

</mosaic_0001>

<llo_original>
// kernel: simclr_projection_head.7
$region0: #{simclr_projection_head.7}
  #allocation0 [shape = 'u32[]', space=smem, size = 0x4, offset = 0x4, fixed_abs, tag = 'smem constant byte address 0x4 - core index']
  #allocation1 [shape = 'u32[72,128]{1,0:T(1,128)}', space=vmem, size = 0x9000, scoped, tag = 'internal scratch']
  %s0 = inlined_call_operand.vmem [shape: bf16[16,128], index: 0, kind: input, shape index: {}]
  %s1 = inlined_call_operand.vmem [shape: f32[1,128], index: 1, kind: input, shape index: {}]
  %s2 = inlined_call_operand.vmem [shape: f32[1,128], index: 2, kind: input, shape index: {}]
  %s3 = inlined_call_operand.hbm [shape: f32[16,128], index: 3, kind: output, shape index: {}]
  %s4 = sld [smem:[#allocation0]]
  $region22: #{simclr_projection_head.7} parent=0
    _
  %s6 = ssub.s32 1, %s4
  %s7 = scalar_select 0, %s6, %s4
  $region1: #{simclr_projection_head.7} parent=0
    #allocation2 [shape = 'u8[8192]{0}', space=vmem, size = 0x2000, scoped, tag = 'output window, operand 0, single buffered']
    #allocation3 [shape = 's32[1]{0}', space=sflag, size = 0x4, scoped, tag = 'scoped memory for simclr_projection_head.7']
    %8 = vsyncpa [#allocation3], 0
    // Predicated region
    $region2: #{simclr_projection_head.7} parent=1 // pred_check
      _
    $region3: #{simclr_projection_head.7} parent=1 // pred_check_branch
      %10 = sbr.rel (0) target = $region5
    $region4: #{simclr_projection_head.7} parent=1 // pred_region
      _
    $region5: #{simclr_projection_head.7} parent=1 // pred_fallthru
      _
    // Predicated region
    $region6: #{simclr_projection_head.7} parent=1 // pred_check
      _
    $region7: #{simclr_projection_head.7} parent=1 // pred_check_branch
      %12 = sbr.rel (0) target = $region9
    $region8: #{simclr_projection_head.7} parent=1 // pred_region
      _
    $region9: #{simclr_projection_head.7} parent=1 // pred_fallthru
      _
    // Predicated region
    $region10: #{simclr_projection_head.7} parent=1 // pred_check
      _
    $region11: #{simclr_projection_head.7} parent=1 // pred_check_branch
      %14 = sbr.rel (0) target = $region13
    $region12: #{simclr_projection_head.7} parent=1 // pred_region
      _
    $region13: #{simclr_projection_head.7} parent=1 // pred_fallthru
      _
    %v15 = vld [vmem:[%s0] sm:$0xf]
    %v16 = vld [vmem:[%s0 + $0x4] sm:$0xf]
    %v17 = vunpack.c.l.bf16 %v15
    %v18 = vunpack.c.l.bf16 %v16
    %v19 = vld [vmem:[%s1] sm:$0x1]
    %v21 = vperm.slane %v19, 0
    %v23 = vmul.f32 %v17, %v21
    %v24 = vmul.f32 %v18, %v21
    %v25 = vld [vmem:[%s2] sm:$0x1]
    %v27 = vperm.slane %v25, 0
    %v29 = vadd.f32 %v23, %v27
    %v30 = vadd.f32 %v24, %v27
    %31 = vst [vmem:[#allocation2] sm:$0xff] %v29
    %32 = vst [vmem:[#allocation2 + $0x8] sm:$0xff] %v30
    // Predicated region
    $region14: #{simclr_projection_head.7} parent=1 // pred_check
      _
    $region15: #{simclr_projection_head.7} parent=1 // pred_check_branch
      %34 = sbr.rel (0) target = $region17
    $region16: #{simclr_projection_head.7} parent=1 // pred_region
      %36 = vsyncadd [#allocation3], 0
      %s37 = sshll.u32 [#allocation2], 4
      %s38 = int_to_ptr.vmem [resolvable:$true] %s37
      %s39 = sshll.u32 %s3, 4
      %s40 = int_to_ptr.hbm [resolvable:$true] %s39
      %45 = dma.vmem_to_hbm [thread:$0]  %s38, 256, %s40, [#allocation3], 128, 128, 8
    $region17: #{simclr_projection_head.7} parent=1 // pred_fallthru
      _
    // Predicated region
    $region18: #{simclr_projection_head.7} parent=1 // pred_check
      _
    $region19: #{simclr_projection_head.7} parent=1 // pred_check_branch
      %47 = sbr.rel (0) target = $region21
    $region20: #{simclr_projection_head.7} parent=1 // pred_region
      %49 = dma.done [#allocation3], 256
    $region21: #{simclr_projection_head.7} parent=1 // pred_fallthru
      _
    %50 = vsyncpa [#allocation3], 1

// kernel: simclr_projection_head.4
$region0: #{simclr_projection_head.4}
  #allocation0 [shape = 'u32[]', space=smem, size = 0x4, offset = 0x4, fixed_abs, tag = 'smem constant byte address 0x4 - core index']
  #allocation1 [shape = 'u32[72,128]{1,0:T(1,128)}', space=vmem, size = 0x9000, scoped, tag = 'internal scratch']
  %s0 = inlined_call_operand.vmem [shape: bf16[16,128], index: 0, kind: input, shape index: {}]
  %s1 = inlined_call_operand.hbm [shape: bf16[128,128], index: 1, kind: input, shape index: {}]
  %s2 = inlined_call_operand.vmem [shape: bf16[16,128], index: 2, kind: output, shape index: {0}]
  %s3 = inlined_call_operand.vmem [shape: f32[16,128], index: 3, kind: output, shape index: {1}]
  %4 = xla_tuple %s2, %s3
  %s5 = sld [smem:[#allocation0]]
  $region53: #{simclr_projection_head.4} parent=0
    _
  %s7 = ssub.s32 1, %s5
  %s8 = scalar_select 0, %s7, %s5
  $region1: #{simclr_projection_head.4} parent=0
    #allocation2 [shape = 'u8[32768]{0}', space=vmem, size = 0x8000, scoped, tag = 'input window, operand 1, single buffered']
    #allocation3 [shape = 's32[2]{0}', space=sflag, size = 0x8, scoped, tag = 'scoped memory for simclr_projection_head.4']
    %9 = vsyncpa [#allocation3], 0
    loop: start=0, step=1, limit=4
    $region2: #{simclr_projection_head.4} parent=1 // loop_pre_header
      _
    $region3: #{simclr_projection_head.4} parent=1 // loop_header
      %s11 = sphi 0, %s15
      %p12 = scmp.ge.s32.totalorder %s11, 4
      %s21 = sphi 0, %s23
      %s24 = sphi 0, %s21
      %s25 = sphi 0, %s24
      %s41 = sphi 0, %s25
      %s45 = sphi 0, %s45
      %s47 = sphi 0, %s45
      %s48 = sphi 0, %s47
      %s62 = sphi 0, %s48
      %s68 = sphi 0, %s70
      %s71 = sphi 0, %s68
      %s72 = sphi 0, %s71
      %s88 = sphi 0, %s72
      %s94 = sphi 0, %s96
      %s97 = sphi 0, %s94
      %s98 = sphi 0, %s97
      %s114 = sphi 0, %s98
    $region4: #{simclr_projection_head.4} parent=1 // loop_header_branch
      %14 = sbr.rel (%p12) target = $region8
    $region5: #{simclr_projection_head.4} parent=1 // loop_body
      %s16 = ssub.s32 %s11, 1
      %s17 = ssub.s32 %s11, 2
      %s18 = sadd.s32 %s11, 1
      %s19 = ssub.s32 %s11, %s18
      %p20 = scmp.eq.s32.totalorder %s19, 0
      %s22 = sadd.s32 %s21, 1
      %s23 = scalar_select %p20, %s21, %s22
      %p26 = pneg %p20
      %p27 = scmp.eq.s32.totalorder %s11, 1
      %p28 = por %p26, %p27
      %p29 = scmp.ne.s32.totalorder %s21, %s24
      %p30 = scmp.eq.s32.totalorder %s11, 0
      %p31 = por %p29, %p30
      %p32 = scmp.ne.s32.totalorder %s21, %s24
      %p33 = scmp.eq.s32.totalorder %s16, 1
      %p34 = por %p32, %p33
      %p35 = scmp.ne.s32.totalorder %s24, %s25
      %p36 = scmp.eq.s32.totalorder %s16, 0
      %p37 = por %p35, %p36
      %p38 = scmp.ne.s32.totalorder %s24, %s25
      %p39 = scmp.eq.s32.totalorder %s17, 1
      %p40 = por %p38, %p39
      %p42 = scmp.ne.s32.totalorder %s25, %s41
      %p43 = scmp.eq.s32.totalorder %s17, 0
      %p44 = por %p42, %p43
      %s46 = sadd.s32 %s45, 1
      %p49 = scmp.eq.s32.totalorder %s11, 1
      %p50 = scmp.ne.s32.totalorder %s45, %s47
      %p51 = scmp.eq.s32.totalorder %s11, 0
      %p52 = por %p50, %p51
      %p53 = scmp.ne.s32.totalorder %s45, %s47
      %p54 = scmp.eq.s32.totalorder %s16, 1
      %p55 = por %p53, %p54
      %p56 = scmp.ne.s32.totalorder %s47, %s48
      %p57 = scmp.eq.s32.totalorder %s16, 0
      %p58 = por %p56, %p57
      %p59 = scmp.ne.s32.totalorder %s47, %s48
      %p60 = scmp.eq.s32.totalorder %s17, 1
      %p61 = por %p59, %p60
      %p63 = scmp.ne.s32.totalorder %s48, %s62
      %p64 = scmp.eq.s32.totalorder %s17, 0
      %p65 = por %p63, %p64
      %s66 = ssub.s32 %s11, %s18
      %p67 = scmp.eq.s32.totalorder %s66, 0
      %s69 = sadd.s32 %s68, 1
      %s70 = scalar_select %p67, %s68, %s69
      %p73 = pneg %p67
      %p74 = scmp.eq.s32.totalorder %s11, 1
      %p75 = por %p73, %p74
      %p76 = scmp.ne.s32.totalorder %s68, %s71
      %p77 = scmp.eq.s32.totalorder %s11, 0
      %p78 = por %p76, %p77
      %p79 = scmp.ne.s32.totalorder %s68, %s71
      %p80 = scmp.eq.s32.totalorder %s16, 1
      %p81 = por %p79, %p80
      %p82 = scmp.ne.s32.totalorder %s71, %s72
      %p83 = scmp.eq.s32.totalorder %s16, 0
      %p84 = por %p82, %p83
      %p85 = scmp.ne.s32.totalorder %s71, %s72
      %p86 = scmp.eq.s32.totalorder %s17, 1
      %p87 = por %p85, %p86
      %p89 = scmp.ne.s32.totalorder %s72, %s88
      %p90 = scmp.eq.s32.totalorder %s17, 0
      %p91 = por %p89, %p90
      %s92 = ssub.s32 %s11, %s18
      %p93 = scmp.eq.s32.totalorder %s92, 0
      %s95 = sadd.s32 %s94, 1
      %s96 = scalar_select %p93, %s94, %s95
      %p99 = pneg %p93
      %p100 = scmp.eq.s32.totalorder %s11, 1
      %p101 = por %p99, %p100
      %p102 = scmp.ne.s32.totalorder %s94, %s97
      %p103 = scmp.eq.s32.totalorder %s11, 0
      %p104 = por %p102, %p103
      %p105 = scmp.ne.s32.totalorder %s94, %s97
      %p106 = scmp.eq.s32.totalorder %s16, 1
      %p107 = por %p105, %p106
      %p108 = scmp.ne.s32.totalorder %s97, %s98
      %p109 = scmp.eq.s32.totalorder %s16, 0
      %p110 = por %p108, %p109
      %p111 = scmp.ne.s32.totalorder %s97, %s98
      %p112 = scmp.eq.s32.totalorder %s17, 1
      %p113 = por %p111, %p112
      %p115 = scmp.ne.s32.totalorder %s98, %s114
      %p116 = scmp.eq.s32.totalorder %s17, 0
      %p117 = por %p115, %p116
      %p118 = scmp.le.s32.totalorder 1, %s11
      %p119 = scmp.lt.s32.totalorder %s11, 3
      %p120 = pnand %p118, %p119
      %p121 = pneg %p120
      // Predicated region
      $region9: #{simclr_projection_head.4} parent=5 // pred_check
        _
      $region10: #{simclr_projection_head.4} parent=5 // pred_check_branch
        %123 = sbr.rel (%p120) target = $region12
      $region11: #{simclr_projection_head.4} parent=5 // pred_region
        %s124 = ssub.s32 %s11, 1
        // Predicated region
        $region13: #{simclr_projection_head.4} parent=11 // pred_check
          %p125 = pneg %p58
        $region14: #{simclr_projection_head.4} parent=11 // pred_check_branch
          %127 = sbr.rel (%p125) target = $region16
        $region15: #{simclr_projection_head.4} parent=11 // pred_region
          %129 = vsyncadd [#allocation3], 0
          %s130 = sshll.u32 %s1, 4
          %s131 = int_to_ptr.hbm [resolvable:$true] %s130
          %s132 = sshll.u32 [#allocation2], 4
          %s133 = int_to_ptr.vmem [resolvable:$true] %s132
          %138 = dma.hbm_to_vmem [thread:$0]  %s131, 1024, %s133, [#allocation3], 64, 64, 4
        $region16: #{simclr_projection_head.4} parent=11 // pred_fallthru
          _
      $region12: #{simclr_projection_head.4} parent=5 // pred_fallthru
        _
      %p139 = scmp.lt.s32.totalorder %s11, 2
      // Predicated region
      $region17: #{simclr_projection_head.4} parent=5 // pred_check
        %p140 = pneg %p139
      $region18: #{simclr_projection_head.4} parent=5 // pred_check_branch
        %142 = sbr.rel (%p140) target = $region20
      $region19: #{simclr_projection_head.4} parent=5 // pred_region
        // Predicated region
        $region21: #{simclr_projection_head.4} parent=19 // pred_check
          %p143 = pneg %p31
        $region22: #{simclr_projection_head.4} parent=19 // pred_check_branch
          %145 = sbr.rel (%p143) target = $region24
        $region23: #{simclr_projection_head.4} parent=19 // pred_region
          %p146 = scmp.lt.s32.totalorder %s11, 1
          %s147 = scalar_select %p146, %s11, 1
          %s148 = smul.addr %s147, 4
          %s149 = scalar_lea.vmem %s0, %s148
        $region24: #{simclr_projection_head.4} parent=19 // pred_fallthru
          _
      $region20: #{simclr_projection_head.4} parent=5 // pred_fallthru
        _
      %p150 = scmp.le.s32.totalorder 1, %s11
      %p151 = scmp.lt.s32.totalorder %s11, 3
      %p152 = pnand %p150, %p151
      %p153 = pneg %p152
      // Predicated region
      $region25: #{simclr_projection_head.4} parent=5 // pred_check
        _
      $region26: #{simclr_projection_head.4} parent=5 // pred_check_branch
        %155 = sbr.rel (%p152) target = $region28
      $region27: #{simclr_projection_head.4} parent=5 // pred_region
        %s156 = ssub.s32 %s11, 1
        // Predicated region
        $region29: #{simclr_projection_head.4} parent=27 // pred_check
          %p157 = pneg %p58
        $region30: #{simclr_projection_head.4} parent=27 // pred_check_branch
          %159 = sbr.rel (%p157) target = $region32
        $region31: #{simclr_projection_head.4} parent=27 // pred_region
          %161 = dma.done [#allocation3], 1024
        $region32: #{simclr_projection_head.4} parent=27 // pred_fallthru
          _
        %p162 = scmp.lt.s32.totalorder %s16, 1
        %s163 = scalar_select %p162, %s16, 1
        %s164 = smul.addr %s163, 4
        %s165 = scalar_lea.vmem %s0, %s164
        %p166 = pneg %p37
        %p167 = pneg %p34
        %p168 = pneg %p58
        %p169 = pneg %p55
        %p170 = pneg %p84
        %p171 = pneg %p81
        %p172 = scmp.lt.s32.totalorder %s16, 1
        %s173 = scalar_select %p172, %s16, 1
        %s174 = smul.addr %s173, 4
        %s175 = scalar_lea.vmem %s2, %s174
        %p176 = pneg %p110
        %p177 = pneg %p107
        %p178 = scmp.lt.s32.totalorder %s16, 1
        %s179 = scalar_select %p178, %s16, 1
        %s180 = smul.addr %s179, 8
        %s181 = scalar_lea.vmem %s3, %s180
        %p182 = scmp.lt.s32.totalorder %s16, 1
        %s183 = scalar_select %p182, %s16, 1
        %s184 = smul.addr %s183, 4
        %s185 = scalar_lea.vmem %s0, %s184
        %p186 = scmp.lt.s32.totalorder %s16, 1
        %s187 = scalar_select %p186, %s16, 1
        %s188 = smul.addr %s187, 4
        %s189 = scalar_lea.vmem %s2, %s188
        %p190 = scmp.lt.s32.totalorder %s16, 1
        %s191 = scalar_select %p190, %s16, 1
        %s192 = smul.addr %s191, 8
        %s193 = scalar_lea.vmem %s3, %s192
        %v194 = vld [vmem:[%s185] sm:$0xf]
        %v195 = vld [vmem:[#allocation2] sm:$0xf]
        %v196 = vld [vmem:[#allocation2 + $0x4] sm:$0xf]
        %v197 = vld [vmem:[#allocation2 + $0x8] sm:$0xf]
        %v198 = vld [vmem:[#allocation2 + $0xc] sm:$0xf]
        %v199 = vld [vmem:[#allocation2 + $0x10] sm:$0xf]
        %v200 = vld [vmem:[#allocation2 + $0x14] sm:$0xf]
        %v201 = vld [vmem:[#allocation2 + $0x18] sm:$0xf]
        %v202 = vld [vmem:[#allocation2 + $0x1c] sm:$0xf]
        %v203 = vld [vmem:[#allocation2 + $0x20] sm:$0xf]
        %v204 = vld [vmem:[#allocation2 + $0x24] sm:$0xf]
        %v205 = vld [vmem:[#allocation2 + $0x28] sm:$0xf]
        %v206 = vld [vmem:[#allocation2 + $0x2c] sm:$0xf]
        %v207 = vld [vmem:[#allocation2 + $0x30] sm:$0xf]
        %v208 = vld [vmem:[#allocation2 + $0x34] sm:$0xf]
        %v209 = vld [vmem:[#allocation2 + $0x38] sm:$0xf]
        %v210 = vld [vmem:[#allocation2 + $0x3c] sm:$0xf]
        %v227 = vunpack.c.l.b16 %v195
        %v228 = vunpack.c.l.b16 %v196
        %v229 = vunpack.c.l.b16 %v197
        %v230 = vunpack.c.l.b16 %v198
        %v231 = vunpack.c.l.b16 %v199
        %v232 = vunpack.c.l.b16 %v200
        %v233 = vunpack.c.l.b16 %v201
        %v234 = vunpack.c.l.b16 %v202
        %v235 = vunpack.c.l.b16 %v203
        %v236 = vunpack.c.l.b16 %v204
        %v237 = vunpack.c.l.b16 %v205
        %v238 = vunpack.c.l.b16 %v206
        %v239 = vunpack.c.l.b16 %v207
        %v240 = vunpack.c.l.b16 %v208
        %v241 = vunpack.c.l.b16 %v209
        %v242 = vunpack.c.l.b16 %v210
        %v243 = vpack.c.b16 %v228, %v227
        %v244 = vpack.c.b16 %v230, %v229
        %v245 = vpack.c.b16 %v232, %v231
        %v246 = vpack.c.b16 %v234, %v233
        %v247 = vpack.c.b16 %v236, %v235
        %v248 = vpack.c.b16 %v238, %v237
        %v249 = vpack.c.b16 %v240, %v239
        %v250 = vpack.c.b16 %v242, %v241
        %259 = vmatpush.bf16.msra.mxu0 %v250
        %260 = vmatpush.bf16.msra.mxu0 %v249
        %261 = vmatpush.bf16.msra.mxu0 %v248
        %262 = vmatpush.bf16.msra.mxu0 %v247
        %263 = vmatpush.bf16.msra.mxu0 %v246
        %264 = vmatpush.bf16.msra.mxu0 %v245
        %265 = vmatpush.bf16.msra.mxu0 %v244
        %266 = vmatpush.bf16.msra.mxu0 %v243
        %267 = vmatmul.bf16.gmra.mxu0 %v194
        %v268 = vpop.f32.mrf.mxu0
        %v269 = vadd.f32 0.0, %v268
        %v270 = vpop.f32.mrf.mxu0
        %271 = vdwg.mxu0
        %v272 = vpack.c.bf16 %v269, %v269
        %273 = vst [vmem:[%s189] sm:$0xf] %v272
        %v274 = vunpack.c.l.bf16 %v272
        %v275 = vrot.slane %v274, 4
        %v276 = vadd.f32 %v274, %v275
        %v277 = vrot.slane %v276, 2
        %v278 = vadd.f32 %v276, %v277
        %v279 = vrot.slane %v278, 1
        %v280 = vadd.f32 %v278, %v279
        %281 = vst [vmem:[%s193] sm:$0x1] %v280
        %v282 = vmul.f32 %v274, %v274
        %v283 = vrot.slane %v282, 4
        %v284 = vadd.f32 %v282, %v283
        %v285 = vrot.slane %v284, 2
        %v286 = vadd.f32 %v284, %v285
        %v287 = vrot.slane %v286, 1
        %v288 = vadd.f32 %v286, %v287
        %289 = vst [vmem:[%s193 + $0x1] sm:$0x1] %v288
        %p290 = scmp.lt.s32.totalorder %s16, 1
        %s291 = scalar_select %p290, %s16, 1
        %s292 = smul.addr %s291, 4
        %s293 = scalar_lea.vmem %s2, %s292
        %p294 = scmp.lt.s32.totalorder %s16, 1
        %s295 = scalar_select %p294, %s16, 1
        %s296 = smul.addr %s295, 8
        %s297 = scalar_lea.vmem %s3, %s296
        // Predicated region
        $region33: #{simclr_projection_head.4} parent=27 // pred_check
          %p298 = pneg %p81
        $region34: #{simclr_projection_head.4} parent=27 // pred_check_branch
          %300 = sbr.rel (%p298) target = $region36
        $region35: #{simclr_projection_head.4} parent=27 // pred_region
          _
        $region36: #{simclr_projection_head.4} parent=27 // pred_fallthru
          _
        // Predicated region
        $region37: #{simclr_projection_head.4} parent=27 // pred_check
          %p301 = pneg %p107
        $region38: #{simclr_projection_head.4} parent=27 // pred_check_branch
          %303 = sbr.rel (%p301) target = $region40
        $region39: #{simclr_projection_head.4} parent=27 // pred_region
          _
        $region40: #{simclr_projection_head.4} parent=27 // pred_fallthru
          _
      $region28: #{simclr_projection_head.4} parent=5 // pred_fallthru
        _
      %p304 = scmp.le.s32.totalorder 2, %s11
      // Predicated region
      $region41: #{simclr_projection_head.4} parent=5 // pred_check
        %p305 = pneg %p304
      $region42: #{simclr_projection_head.4} parent=5 // pred_check_branch
        %307 = sbr.rel (%p305) target = $region44
      $region43: #{simclr_projection_head.4} parent=5 // pred_region
        %s308 = ssub.s32 %s11, 2
        // Predicated region
        $region45: #{simclr_projection_head.4} parent=43 // pred_check
          %p309 = pneg %p87
        $region46: #{simclr_projection_head.4} parent=43 // pred_check_branch
          %311 = sbr.rel (%p309) target = $region48
        $region47: #{simclr_projection_head.4} parent=43 // pred_region
          %p312 = scmp.lt.s32.totalorder %s17, 1
          %s313 = scalar_select %p312, %s17, 1
          %s314 = smul.addr %s313, 4
          %s315 = scalar_lea.vmem %s2, %s314
        $region48: #{simclr_projection_head.4} parent=43 // pred_fallthru
          _
        // Predicated region
        $region49: #{simclr_projection_head.4} parent=43 // pred_check
          %p316 = pneg %p113
        $region50: #{simclr_projection_head.4} parent=43 // pred_check_branch
          %318 = sbr.rel (%p316) target = $region52
        $region51: #{simclr_projection_head.4} parent=43 // pred_region
          %p319 = scmp.lt.s32.totalorder %s17, 1
          %s320 = scalar_select %p319, %s17, 1
          %s321 = smul.addr %s320, 8
          %s322 = scalar_lea.vmem %s3, %s321
        $region52: #{simclr_projection_head.4} parent=43 // pred_fallthru
          _
      $region44: #{simclr_projection_head.4} parent=5 // pred_fallthru
        _
    $region6: #{simclr_projection_head.4} parent=1 // loop_footer
      %s15 = sadd.s32 1, %s11
    $region7: #{simclr_projection_head.4} parent=1 // loop_footer_branch
      %10 = sbr.rel target = $region3
    $region8: #{simclr_projection_head.4} parent=1 // loop_exit
      _
    %323 = vsyncpa [#allocation3], 1
    %s324 = scalar_lea.sflag [#allocation3], 1
    %325 = vsyncpa %s324, 1

// kernel: simclr_projection_head.5
$region0: #{simclr_projection_head.5}
  #allocation0 [shape = 'u32[]', space=smem, size = 0x4, offset = 0x4, fixed_abs, tag = 'smem constant byte address 0x4 - core index']
  #allocation1 [shape = 'u32[72,128]{1,0:T(1,128)}', space=vmem, size = 0x9000, scoped, tag = 'internal scratch']
  %s0 = inlined_call_operand.vmem [shape: bf16[16,128], index: 0, kind: input, shape index: {}]
  %s1 = inlined_call_operand.vmem [shape: f32[1,128], index: 1, kind: input, shape index: {}]
  %s2 = inlined_call_operand.vmem [shape: f32[1,128], index: 2, kind: input, shape index: {}]
  %s3 = inlined_call_operand.vmem [shape: bf16[128,128], index: 3, kind: input, shape index: {}]
  %s4 = inlined_call_operand.vmem [shape: bf16[16,128], index: 4, kind: output, shape index: {0}]
  %s5 = inlined_call_operand.vmem [shape: f32[16,128], index: 5, kind: output, shape index: {1}]
  %6 = xla_tuple %s4, %s5
  %s7 = sld [smem:[#allocation0]]
  $region57: #{simclr_projection_head.5} parent=0
    _
  %s9 = ssub.s32 1, %s7
  %s10 = scalar_select 0, %s9, %s7
  loop: start=0, step=1, limit=4
  $region2: #{simclr_projection_head.5} parent=0 // loop_pre_header
    _
  $region3: #{simclr_projection_head.5} parent=0 // loop_header
    %s12 = sphi 0, %s16
    %p13 = scmp.ge.s32.totalorder %s12, 4
    %s22 = sphi 0, %s24
    %s25 = sphi 0, %s22
    %s26 = sphi 0, %s25
    %s42 = sphi 0, %s26
    %s46 = sphi 0, %s46
    %s48 = sphi 0, %s46
    %s49 = sphi 0, %s48
    %s63 = sphi 0, %s49
    %s67 = sphi 0, %s67
    %s69 = sphi 0, %s67
    %s70 = sphi 0, %s69
    %s84 = sphi 0, %s70
    %s88 = sphi 0, %s88
    %s90 = sphi 0, %s88
    %s91 = sphi 0, %s90
    %s105 = sphi 0, %s91
    %s111 = sphi 0, %s113
    %s114 = sphi 0, %s111
    %s115 = sphi 0, %s114
    %s131 = sphi 0, %s115
    %s137 = sphi 0, %s139
    %s140 = sphi 0, %s137
    %s141 = sphi 0, %s140
    %s157 = sphi 0, %s141
  $region4: #{simclr_projection_head.5} parent=0 // loop_header_branch
    %15 = sbr.rel (%p13) target = $region8
  $region5: #{simclr_projection_head.5} parent=0 // loop_body
    %s17 = ssub.s32 %s12, 1
    %s18 = ssub.s32 %s12, 2
    %s19 = sadd.s32 %s12, 1
    %s20 = ssub.s32 %s12, %s19
    %p21 = scmp.eq.s32.totalorder %s20, 0
    %s23 = sadd.s32 %s22, 1
    %s24 = scalar_select %p21, %s22, %s23
    %p27 = pneg %p21
    %p28 = scmp.eq.s32.totalorder %s12, 1
    %p29 = por %p27, %p28
    %p30 = scmp.ne.s32.totalorder %s22, %s25
    %p31 = scmp.eq.s32.totalorder %s12, 0
    %p32 = por %p30, %p31
    %p33 = scmp.ne.s32.totalorder %s22, %s25
    %p34 = scmp.eq.s32.totalorder %s17, 1
    %p35 = por %p33, %p34
    %p36 = scmp.ne.s32.totalorder %s25, %s26
    %p37 = scmp.eq.s32.totalorder %s17, 0
    %p38 = por %p36, %p37
    %p39 = scmp.ne.s32.totalorder %s25, %s26
    %p40 = scmp.eq.s32.totalorder %s18, 1
    %p41 = por %p39, %p40
    %p43 = scmp.ne.s32.totalorder %s26, %s42
    %p44 = scmp.eq.s32.totalorder %s18, 0
    %p45 = por %p43, %p44
    %s47 = sadd.s32 %s46, 1
    %p50 = scmp.eq.s32.totalorder %s12, 1
    %p51 = scmp.ne.s32.totalorder %s46, %s48
    %p52 = scmp.eq.s32.totalorder %s12, 0
    %p53 = por %p51, %p52
    %p54 = scmp.ne.s32.totalorder %s46, %s48
    %p55 = scmp.eq.s32.totalorder %s17, 1
    %p56 = por %p54, %p55
    %p57 = scmp.ne.s32.totalorder %s48, %s49
    %p58 = scmp.eq.s32.totalorder %s17, 0
    %p59 = por %p57, %p58
    %p60 = scmp.ne.s32.totalorder %s48, %s49
    %p61 = scmp.eq.s32.totalorder %s18, 1
    %p62 = por %p60, %p61
    %p64 = scmp.ne.s32.totalorder %s49, %s63
    %p65 = scmp.eq.s32.totalorder %s18, 0
    %p66 = por %p64, %p65
    %s68 = sadd.s32 %s67, 1
    %p71 = scmp.eq.s32.totalorder %s12, 1
    %p72 = scmp.ne.s32.totalorder %s67, %s69
    %p73 = scmp.eq.s32.totalorder %s12, 0
    %p74 = por %p72, %p73
    %p75 = scmp.ne.s32.totalorder %s67, %s69
    %p76 = scmp.eq.s32.totalorder %s17, 1
    %p77 = por %p75, %p76
    %p78 = scmp.ne.s32.totalorder %s69, %s70
    %p79 = scmp.eq.s32.totalorder %s17, 0
    %p80 = por %p78, %p79
    %p81 = scmp.ne.s32.totalorder %s69, %s70
    %p82 = scmp.eq.s32.totalorder %s18, 1
    %p83 = por %p81, %p82
    %p85 = scmp.ne.s32.totalorder %s70, %s84
    %p86 = scmp.eq.s32.totalorder %s18, 0
    %p87 = por %p85, %p86
    %s89 = sadd.s32 %s88, 1
    %p92 = scmp.eq.s32.totalorder %s12, 1
    %p93 = scmp.ne.s32.totalorder %s88, %s90
    %p94 = scmp.eq.s32.totalorder %s12, 0
    %p95 = por %p93, %p94
    %p96 = scmp.ne.s32.totalorder %s88, %s90
    %p97 = scmp.eq.s32.totalorder %s17, 1
    %p98 = por %p96, %p97
    %p99 = scmp.ne.s32.totalorder %s90, %s91
    %p100 = scmp.eq.s32.totalorder %s17, 0
    %p101 = por %p99, %p100
    %p102 = scmp.ne.s32.totalorder %s90, %s91
    %p103 = scmp.eq.s32.totalorder %s18, 1
    %p104 = por %p102, %p103
    %p106 = scmp.ne.s32.totalorder %s91, %s105
    %p107 = scmp.eq.s32.totalorder %s18, 0
    %p108 = por %p106, %p107
    %s109 = ssub.s32 %s12, %s19
    %p110 = scmp.eq.s32.totalorder %s109, 0
    %s112 = sadd.s32 %s111, 1
    %s113 = scalar_select %p110, %s111, %s112
    %p116 = pneg %p110
    %p117 = scmp.eq.s32.totalorder %s12, 1
    %p118 = por %p116, %p117
    %p119 = scmp.ne.s32.totalorder %s111, %s114
    %p120 = scmp.eq.s32.totalorder %s12, 0
    %p121 = por %p119, %p120
    %p122 = scmp.ne.s32.totalorder %s111, %s114
    %p123 = scmp.eq.s32.totalorder %s17, 1
    %p124 = por %p122, %p123
    %p125 = scmp.ne.s32.totalorder %s114, %s115
    %p126 = scmp.eq.s32.totalorder %s17, 0
    %p127 = por %p125, %p126
    %p128 = scmp.ne.s32.totalorder %s114, %s115
    %p129 = scmp.eq.s32.totalorder %s18, 1
    %p130 = por %p128, %p129
    %p132 = scmp.ne.s32.totalorder %s115, %s131
    %p133 = scmp.eq.s32.totalorder %s18, 0
    %p134 = por %p132, %p133
    %s135 = ssub.s32 %s12, %s19
    %p136 = scmp.eq.s32.totalorder %s135, 0
    %s138 = sadd.s32 %s137, 1
    %s139 = scalar_select %p136, %s137, %s138
    %p142 = pneg %p136
    %p143 = scmp.eq.s32.totalorder %s12, 1
    %p144 = por %p142, %p143
    %p145 = scmp.ne.s32.totalorder %s137, %s140
    %p146 = scmp.eq.s32.totalorder %s12, 0
    %p147 = por %p145, %p146
    %p148 = scmp.ne.s32.totalorder %s137, %s140
    %p149 = scmp.eq.s32.totalorder %s17, 1
    %p150 = por %p148, %p149
    %p151 = scmp.ne.s32.totalorder %s140, %s141
    %p152 = scmp.eq.s32.totalorder %s17, 0
    %p153 = por %p151, %p152
    %p154 = scmp.ne.s32.totalorder %s140, %s141
    %p155 = scmp.eq.s32.totalorder %s18, 1
    %p156 = por %p154, %p155
    %p158 = scmp.ne.s32.totalorder %s141, %s157
    %p159 = scmp.eq.s32.totalorder %s18, 0
    %p160 = por %p158, %p159
    %p161 = scmp.le.s32.totalorder 1, %s12
    %p162 = scmp.lt.s32.totalorder %s12, 3
    %p163 = pnand %p161, %p162
    %p164 = pneg %p163
    // Predicated region
    $region9: #{simclr_projection_head.5} parent=5 // pred_check
      _
    $region10: #{simclr_projection_head.5} parent=5 // pred_check_branch
      %166 = sbr.rel (%p163) target = $region12
    $region11: #{simclr_projection_head.5} parent=5 // pred_region
      %s167 = ssub.s32 %s12, 1
      // Predicated region
      $region13: #{simclr_projection_head.5} parent=11 // pred_check
        %p168 = pneg %p59
      $region14: #{simclr_projection_head.5} parent=11 // pred_check_branch
        %170 = sbr.rel (%p168) target = $region16
      $region15: #{simclr_projection_head.5} parent=11 // pred_region
        _
      $region16: #{simclr_projection_head.5} parent=11 // pred_fallthru
        _
      // Predicated region
      $region17: #{simclr_projection_head.5} parent=11 // pred_check
        %p171 = pneg %p80
      $region18: #{simclr_projection_head.5} parent=11 // pred_check_branch
        %173 = sbr.rel (%p171) target = $region20
      $region19: #{simclr_projection_head.5} parent=11 // pred_region
        _
      $region20: #{simclr_projection_head.5} parent=11 // pred_fallthru
        _
      // Predicated region
      $region21: #{simclr_projection_head.5} parent=11 // pred_check
        %p174 = pneg %p101
      $region22: #{simclr_projection_head.5} parent=11 // pred_check_branch
        %176 = sbr.rel (%p174) target = $region24
      $region23: #{simclr_projection_head.5} parent=11 // pred_region
        _
      $region24: #{simclr_projection_head.5} parent=11 // pred_fallthru
        _
    $region12: #{simclr_projection_head.5} parent=5 // pred_fallthru
      _
    %p177 = scmp.lt.s32.totalorder %s12, 2
    // Predicated region
    $region25: #{simclr_projection_head.5} parent=5 // pred_check
      %p178 = pneg %p177
    $region26: #{simclr_projection_head.5} parent=5 // pred_check_branch
      %180 = sbr.rel (%p178) target = $region28
    $region27: #{simclr_projection_head.5} parent=5 // pred_region
      // Predicated region
      $region29: #{simclr_projection_head.5} parent=27 // pred_check
        %p181 = pneg %p32
      $region30: #{simclr_projection_head.5} parent=27 // pred_check_branch
        %183 = sbr.rel (%p181) target = $region32
      $region31: #{simclr_projection_head.5} parent=27 // pred_region
        %p184 = scmp.lt.s32.totalorder %s12, 1
        %s185 = scalar_select %p184, %s12, 1
        %s186 = smul.addr %s185, 4
        %s187 = scalar_lea.vmem %s0, %s186
      $region32: #{simclr_projection_head.5} parent=27 // pred_fallthru
        _
    $region28: #{simclr_projection_head.5} parent=5 // pred_fallthru
      _
    %p188 = scmp.le.s32.totalorder 1, %s12
    %p189 = scmp.lt.s32.totalorder %s12, 3
    %p190 = pnand %p188, %p189
    %p191 = pneg %p190
    // Predicated region
    $region33: #{simclr_projection_head.5} parent=5 // pred_check
      _
    $region34: #{simclr_projection_head.5} parent=5 // pred_check_branch
      %193 = sbr.rel (%p190) target = $region36
    $region35: #{simclr_projection_head.5} parent=5 // pred_region
      %s194 = ssub.s32 %s12, 1
      %p195 = scmp.lt.s32.totalorder %s17, 1
      %s196 = scalar_select %p195, %s17, 1
      %s197 = smul.addr %s196, 4
      %s198 = scalar_lea.vmem %s0, %s197
      %p199 = pneg %p38
      %p200 = pneg %p35
      %p201 = pneg %p59
      %p202 = pneg %p56
      %p203 = pneg %p80
      %p204 = pneg %p77
      %p205 = pneg %p101
      %p206 = pneg %p98
      %p207 = pneg %p127
      %p208 = pneg %p124
      %p209 = scmp.lt.s32.totalorder %s17, 1
      %s210 = scalar_select %p209, %s17, 1
      %s211 = smul.addr %s210, 4
      %s212 = scalar_lea.vmem %s4, %s211
      %p213 = pneg %p153
      %p214 = pneg %p150
      %p215 = scmp.lt.s32.totalorder %s17, 1
      %s216 = scalar_select %p215, %s17, 1
      %s217 = smul.addr %s216, 8
      %s218 = scalar_lea.vmem %s5, %s217
      %p219 = scmp.lt.s32.totalorder %s17, 1
      %s220 = scalar_select %p219, %s17, 1
      %s221 = smul.addr %s220, 4
      %s222 = scalar_lea.vmem %s0, %s221
      %p223 = scmp.lt.s32.totalorder %s17, 1
      %s224 = scalar_select %p223, %s17, 1
      %s225 = smul.addr %s224, 4
      %s226 = scalar_lea.vmem %s4, %s225
      %p227 = scmp.lt.s32.totalorder %s17, 1
      %s228 = scalar_select %p227, %s17, 1
      %s229 = smul.addr %s228, 8
      %s230 = scalar_lea.vmem %s5, %s229
      %v231 = vld [vmem:[%s222] sm:$0xf]
      %v232 = vunpack.c.l.bf16 %v231
      %v233 = vld [vmem:[%s1] sm:$0x1]
      %v235 = vperm.slane %v233, 0
      %v237 = vmul.f32 %v232, %v235
      %v238 = vld [vmem:[%s2] sm:$0x1]
      %v240 = vperm.slane %v238, 0
      %v242 = vadd.f32 %v237, %v240
      %v243 = vmax.f32 %v242, 0.0
      %v244 = vlaneseq
      %v245 = vshrl.u32 %v244, 7
      %s246 = smul.u32 %s17, 8
      %v247 = vstv %s246
      %v248 = vadd.s32 %v245, %v247
      %vm249 = vcmp.lt.s32.totalorder %v248, 12
      %v250 = vsel %vm249, %v243, 0.0
      %v251 = vpack.c.bf16 %v250, %v250
      %v252 = vld [vmem:[%s3] sm:$0xf]
      %v253 = vld [vmem:[%s3 + $0x4] sm:$0xf]
      %v254 = vld [vmem:[%s3 + $0x8] sm:$0xf]
      %v255 = vld [vmem:[%s3 + $0xc] sm:$0xf]
      %v256 = vld [vmem:[%s3 + $0x10] sm:$0xf]
      %v257 = vld [vmem:[%s3 + $0x14] sm:$0xf]
      %v258 = vld [vmem:[%s3 + $0x18] sm:$0xf]
      %v259 = vld [vmem:[%s3 + $0x1c] sm:$0xf]
      %v260 = vld [vmem:[%s3 + $0x20] sm:$0xf]
      %v261 = vld [vmem:[%s3 + $0x24] sm:$0xf]
      %v262 = vld [vmem:[%s3 + $0x28] sm:$0xf]
      %v263 = vld [vmem:[%s3 + $0x2c] sm:$0xf]
      %v264 = vld [vmem:[%s3 + $0x30] sm:$0xf]
      %v265 = vld [vmem:[%s3 + $0x34] sm:$0xf]
      %v266 = vld [vmem:[%s3 + $0x38] sm:$0xf]
      %v267 = vld [vmem:[%s3 + $0x3c] sm:$0xf]
      %v284 = vunpack.c.l.b16 %v252
      %v285 = vunpack.c.l.b16 %v253
      %v286 = vunpack.c.l.b16 %v254
      %v287 = vunpack.c.l.b16 %v255
      %v288 = vunpack.c.l.b16 %v256
      %v289 = vunpack.c.l.b16 %v257
      %v290 = vunpack.c.l.b16 %v258
      %v291 = vunpack.c.l.b16 %v259
      %v292 = vunpack.c.l.b16 %v260
      %v293 = vunpack.c.l.b16 %v261
      %v294 = vunpack.c.l.b16 %v262
      %v295 = vunpack.c.l.b16 %v263
      %v296 = vunpack.c.l.b16 %v264
      %v297 = vunpack.c.l.b16 %v265
      %v298 = vunpack.c.l.b16 %v266
      %v299 = vunpack.c.l.b16 %v267
      %v300 = vpack.c.b16 %v285, %v284
      %v301 = vpack.c.b16 %v287, %v286
      %v302 = vpack.c.b16 %v289, %v288
      %v303 = vpack.c.b16 %v291, %v290
      %v304 = vpack.c.b16 %v293, %v292
      %v305 = vpack.c.b16 %v295, %v294
      %v306 = vpack.c.b16 %v297, %v296
      %v307 = vpack.c.b16 %v299, %v298
      %316 = vmatpush.bf16.msra.mxu0 %v307
      %317 = vmatpush.bf16.msra.mxu0 %v306
      %318 = vmatpush.bf16.msra.mxu0 %v305
      %319 = vmatpush.bf16.msra.mxu0 %v304
      %320 = vmatpush.bf16.msra.mxu0 %v303
      %321 = vmatpush.bf16.msra.mxu0 %v302
      %322 = vmatpush.bf16.msra.mxu0 %v301
      %323 = vmatpush.bf16.msra.mxu0 %v300
      %324 = vmatmul.bf16.gmra.mxu0 %v251
      %v325 = vpop.f32.mrf.mxu0
      %v326 = vadd.f32 0.0, %v325
      %v327 = vpop.f32.mrf.mxu0
      %328 = vdwg.mxu0
      %v329 = vpack.c.bf16 %v326, %v326
      %330 = vst [vmem:[%s226] sm:$0xf] %v329
      %v331 = vunpack.c.l.bf16 %v329
      %v332 = vrot.slane %v331, 4
      %v333 = vadd.f32 %v331, %v332
      %v334 = vrot.slane %v333, 2
      %v335 = vadd.f32 %v333, %v334
      %v336 = vrot.slane %v335, 1
      %v337 = vadd.f32 %v335, %v336
      %338 = vst [vmem:[%s230] sm:$0x1] %v337
      %v339 = vmul.f32 %v331, %v331
      %v340 = vrot.slane %v339, 4
      %v341 = vadd.f32 %v339, %v340
      %v342 = vrot.slane %v341, 2
      %v343 = vadd.f32 %v341, %v342
      %v344 = vrot.slane %v343, 1
      %v345 = vadd.f32 %v343, %v344
      %346 = vst [vmem:[%s230 + $0x1] sm:$0x1] %v345
      %p347 = scmp.lt.s32.totalorder %s17, 1
      %s348 = scalar_select %p347, %s17, 1
      %s349 = smul.addr %s348, 4
      %s350 = scalar_lea.vmem %s4, %s349
      %p351 = scmp.lt.s32.totalorder %s17, 1
      %s352 = scalar_select %p351, %s17, 1
      %s353 = smul.addr %s352, 8
      %s354 = scalar_lea.vmem %s5, %s353
      // Predicated region
      $region37: #{simclr_projection_head.5} parent=35 // pred_check
        %p355 = pneg %p124
      $region38: #{simclr_projection_head.5} parent=35 // pred_check_branch
        %357 = sbr.rel (%p355) target = $region40
      $region39: #{simclr_projection_head.5} parent=35 // pred_region
        _
      $region40: #{simclr_projection_head.5} parent=35 // pred_fallthru
        _
      // Predicated region
      $region41: #{simclr_projection_head.5} parent=35 // pred_check
        %p358 = pneg %p150
      $region42: #{simclr_projection_head.5} parent=35 // pred_check_branch
        %360 = sbr.rel (%p358) target = $region44
      $region43: #{simclr_projection_head.5} parent=35 // pred_region
        _
      $region44: #{simclr_projection_head.5} parent=35 // pred_fallthru
        _
    $region36: #{simclr_projection_head.5} parent=5 // pred_fallthru
      _
    %p361 = scmp.le.s32.totalorder 2, %s12
    // Predicated region
    $region45: #{simclr_projection_head.5} parent=5 // pred_check
      %p362 = pneg %p361
    $region46: #{simclr_projection_head.5} parent=5 // pred_check_branch
      %364 = sbr.rel (%p362) target = $region48
    $region47: #{simclr_projection_head.5} parent=5 // pred_region
      %s365 = ssub.s32 %s12, 2
      // Predicated region
      $region49: #{simclr_projection_head.5} parent=47 // pred_check
        %p366 = pneg %p130
      $region50: #{simclr_projection_head.5} parent=47 // pred_check_branch
        %368 = sbr.rel (%p366) target = $region52
      $region51: #{simclr_projection_head.5} parent=47 // pred_region
        %p369 = scmp.lt.s32.totalorder %s18, 1
        %s370 = scalar_select %p369, %s18, 1
        %s371 = smul.addr %s370, 4
        %s372 = scalar_lea.vmem %s4, %s371
      $region52: #{simclr_projection_head.5} parent=47 // pred_fallthru
        _
      // Predicated region
      $region53: #{simclr_projection_head.5} parent=47 // pred_check
        %p373 = pneg %p156
      $region54: #{simclr_projection_head.5} parent=47 // pred_check_branch
        %375 = sbr.rel (%p373) target = $region56
      $region55: #{simclr_projection_head.5} parent=47 // pred_region
        %p376 = scmp.lt.s32.totalorder %s18, 1
        %s377 = scalar_select %p376, %s18, 1
        %s378 = smul.addr %s377, 8
        %s379 = scalar_lea.vmem %s5, %s378
      $region56: #{simclr_projection_head.5} parent=47 // pred_fallthru
        _
    $region48: #{simclr_projection_head.5} parent=5 // pred_fallthru
      _
  $region6: #{simclr_projection_head.5} parent=0 // loop_footer
    %s16 = sadd.s32 1, %s12
  $region7: #{simclr_projection_head.5} parent=0 // loop_footer_branch
    %11 = sbr.rel target = $region3
  $region8: #{simclr_projection_head.5} parent=0 // loop_exit
    _

</llo_original>
